<compile_context>
chip_gen: v7x
topology: tpu7x:2x2x1
jax: 0.10.0
libtpu: 0.0.40
codegen_flags: <defaults>
</compile_context>

<pallas_src>
import jax
import jax.numpy as jnp
from jax.experimental import pallas as pl
from jax.experimental.pallas import tpu as pltpu

EPS = 1e-5
VMEM_LIMIT = 64 * 1024 * 1024


# ---------------------------------------------------------------------------
# Fused tiled matmul (1x1 conv + BN/ReLU/residual fusion)
# ---------------------------------------------------------------------------

def _pick_tile(dim, prefs):
    for p in prefs:
        if p <= dim and dim % p == 0:
            return p
    return dim


def _make_mm_kernel(use_pre_affine, use_pre_relu, use_post_bias, use_post_relu,
                    use_residual, use_post2, out_dtype):
    def kernel(*refs):
        idx = 0
        x_ref = refs[idx]; idx += 1
        w_ref = refs[idx]; idx += 1
        if use_pre_affine:
            pre_s, pre_b = refs[idx], refs[idx + 1]; idx += 2
        if use_post_bias:
            pb = refs[idx]; idx += 1
        if use_residual:
            res = refs[idx]; idx += 1
        if use_post2:
            p2s, p2b = refs[idx], refs[idx + 1]; idx += 2
        o_ref = refs[idx]
        acc_ref = refs[idx + 1]

        k = pl.program_id(2)

        @pl.when(k == 0)
        def _init():
            acc_ref[...] = jnp.zeros_like(acc_ref)

        lhs = x_ref[...]
        if use_pre_affine or use_pre_relu:
            lhs = lhs.astype(jnp.float32)
            if use_pre_affine:
                lhs = lhs * pre_s[...] + pre_b[...]
            if use_pre_relu:
                lhs = jnp.maximum(lhs, 0.0)
        lhs = lhs.astype(w_ref.dtype)
        acc_ref[...] += jnp.dot(lhs, w_ref[...],
                                preferred_element_type=jnp.float32)

        @pl.when(k == pl.num_programs(2) - 1)
        def _finalize():
            out = acc_ref[...]
            if use_post_bias:
                out = out + pb[...]
            if use_post_relu:
                out = jnp.maximum(out, 0.0)
            if use_residual:
                out = out + res[...].astype(jnp.float32)
            if use_post2:
                out = jnp.maximum(out * p2s[...] + p2b[...], 0.0)
            o_ref[...] = out.astype(out_dtype)

    return kernel


def fused_matmul(x2d, w2d, *, pre_scale=None, pre_bias=None, pre_relu=False,
                 post_bias=None, post_relu=False, residual=None,
                 post2_scale=None, post2_bias=None, out_dtype=jnp.float32):
    """out = epilogue( pre(x2d) @ w2d ), all fused in one tiled Pallas kernel."""
    M, K = x2d.shape
    K2, Nc = w2d.shape
    assert K == K2

    tm = _pick_tile(M, (256, 512, 128, 64, 32, 16, 8))
    tn = _pick_tile(Nc, (256, 128))
    tk = _pick_tile(K, (512, 256, 128))
    grid = (M // tm, Nc // tn, K // tk)

    args = [x2d, w2d]
    in_specs = [pl.BlockSpec((tm, tk), lambda i, j, k: (i, k)),
                pl.BlockSpec((tk, tn), lambda i, j, k: (k, j))]

    use_pre_affine = pre_scale is not None
    if use_pre_affine:
        args += [pre_scale.reshape(1, K).astype(jnp.float32),
                 pre_bias.reshape(1, K).astype(jnp.float32)]
        in_specs += [pl.BlockSpec((1, tk), lambda i, j, k: (0, k)),
                     pl.BlockSpec((1, tk), lambda i, j, k: (0, k))]
    use_post_bias = post_bias is not None
    if use_post_bias:
        args.append(post_bias.reshape(1, Nc).astype(jnp.float32))
        in_specs.append(pl.BlockSpec((1, tn), lambda i, j, k: (0, j)))
    use_residual = residual is not None
    if use_residual:
        args.append(residual)
        in_specs.append(pl.BlockSpec((tm, tn), lambda i, j, k: (i, j)))
    use_post2 = post2_scale is not None
    if use_post2:
        args += [post2_scale.reshape(1, Nc).astype(jnp.float32),
                 post2_bias.reshape(1, Nc).astype(jnp.float32)]
        in_specs += [pl.BlockSpec((1, tn), lambda i, j, k: (0, j)),
                     pl.BlockSpec((1, tn), lambda i, j, k: (0, j))]

    kernel = _make_mm_kernel(use_pre_affine, pre_relu, use_post_bias,
                             post_relu, use_residual, use_post2, out_dtype)
    return pl.pallas_call(
        kernel,
        grid=grid,
        in_specs=in_specs,
        out_specs=pl.BlockSpec((tm, tn), lambda i, j, k: (i, j)),
        out_shape=jax.ShapeDtypeStruct((M, Nc), out_dtype),
        scratch_shapes=[pltpu.VMEM((tm, tn), jnp.float32)],
        compiler_params=pltpu.CompilerParams(
            dimension_semantics=("parallel", "parallel", "arbitrary"),
            vmem_limit_bytes=VMEM_LIMIT),
    )(*args)


# ---------------------------------------------------------------------------
# Fused 3x3 conv (stride via shifted row index_maps; no im2col in HBM)
# ---------------------------------------------------------------------------

def _make_conv3_kernel(w_out, cin, do_relu, out_dtype):
    def kernel(r0_ref, r1_ref, r2_ref, w_ref, b_ref, o_ref):
        rows = (r0_ref, r1_ref, r2_ref)
        parts = []
        for di in range(3):
            row = rows[di][...]                  # (Wp, Cin) bf16
            for dj in range(3):
                parts.append(row[dj:dj + w_out, :])
        lhs = jnp.concatenate(parts, axis=-1)    # (W_out, 9*Cin) bf16
        out = jnp.dot(lhs, w_ref[...], preferred_element_type=jnp.float32)
        out = out + b_ref[...]
        if do_relu:
            out = jnp.maximum(out, 0.0)
        o_ref[...] = out.astype(out_dtype)
    return kernel


def conv3x3_bn_act(x_nhwc, w_oihw, bn, *, stride=1, relu=True,
                   out_dtype=jnp.bfloat16):
    """3x3 conv (pad=1) with BN folded into weights and fused bias+ReLU."""
    N, H, W, Cin = x_nhwc.shape
    Cout = w_oihw.shape[0]

    scale, bias = bn_scale_bias(bn)
    w_f = w_oihw * scale[:, None, None, None]                    # fold BN scale
    w2 = jnp.transpose(w_f, (2, 3, 1, 0)).reshape(9 * Cin, Cout)
    w2 = w2.astype(jnp.bfloat16)
    bias2 = bias.reshape(1, Cout).astype(jnp.float32)

    xp = jnp.pad(x_nhwc.astype(jnp.bfloat16), ((0, 0), (1, 1), (1, 1), (0, 0)))
    Hp, Wp = H + 2, W + 2
    Ho = (H + 2 - 3) // stride + 1
    Wo = (W + 2 - 3) // stride + 1
    W1 = W  # stride-1 output width computed in-kernel; subsampled below if needed

    def row_spec(di):
        return pl.BlockSpec((None, None, Wp, Cin),
                            lambda n, h, di=di: (n, h * stride + di, 0, 0))

    kernel = _make_conv3_kernel(W1, Cin, relu, out_dtype)
    out = pl.pallas_call(
        kernel,
        grid=(N, Ho),
        in_specs=[row_spec(0), row_spec(1), row_spec(2),
                  pl.BlockSpec((9 * Cin, Cout), lambda n, h: (0, 0)),
                  pl.BlockSpec((1, Cout), lambda n, h: (0, 0))],
        out_specs=pl.BlockSpec((None, None, W1, Cout),
                               lambda n, h: (n, h, 0, 0)),
        out_shape=jax.ShapeDtypeStruct((N, Ho, W1, Cout), out_dtype),
        compiler_params=pltpu.CompilerParams(
            dimension_semantics=("parallel", "parallel"),
            vmem_limit_bytes=VMEM_LIMIT),
    )(xp, xp, xp, w2, bias2)

    if stride > 1:
        out = out[:, :, ::stride, :]             # pick the stride-s columns
        out = out[:, :, :Wo, :]
    return out


# ---------------------------------------------------------------------------
# BatchNorm folding helpers (inference mode)
# ---------------------------------------------------------------------------

def bn_scale_bias(bn):
    scale = bn['gamma'] / jnp.sqrt(bn['var'] + EPS)
    bias = bn['beta'] - bn['mean'] * scale
    return scale, bias


def fold_bn_into_w1x1(w_oihw, bn):
    scale, bias = bn_scale_bias(bn)
    w2d = jnp.transpose(w_oihw[:, :, 0, 0])                  # (I, O)
    return (w2d * scale[None, :]).astype(jnp.bfloat16), bias.reshape(1, -1)


# ---------------------------------------------------------------------------
# Parameters (mirroring the PyTorch module, inference BN stats)
# ---------------------------------------------------------------------------

def init_bn(c):
    return dict(gamma=jnp.ones((c,), jnp.float32),
                beta=jnp.zeros((c,), jnp.float32),
                mean=jnp.zeros((c,), jnp.float32),
                var=jnp.ones((c,), jnp.float32))


def init_conv(key, out_c, in_c, kh, kw):
    std = (2.0 / (out_c * kh * kw)) ** 0.5
    return std * jax.random.normal(key, (out_c, in_c, kh, kw), jnp.float32)


def init_bottleneck(key, inplanes, planes, *, stride=1, downsample=False,
                    start_block=False, end_block=False, exclude_bn0=False):
    expansion = 4
    keys = jax.random.split(key, 8)
    p = dict(cfg=dict(stride=stride, start_block=start_block,
                      end_block=end_block, exclude_bn0=exclude_bn0,
                      inplanes=inplanes, planes=planes))
    if (not start_block) and (not exclude_bn0):
        p['bn0'] = init_bn(inplanes)
    p['conv1'] = init_conv(keys[0], planes, inplanes, 1, 1)
    p['bn1'] = init_bn(planes)
    p['conv2'] = init_conv(keys[1], planes, planes, 3, 3)
    p['bn2'] = init_bn(planes)
    p['conv3'] = init_conv(keys[2], planes * expansion, planes, 1, 1)
    if start_block or end_block:
        p['bn3'] = init_bn(planes * expansion)
    if downsample:
        p['downsample'] = dict(
            conv=init_conv(keys[3], planes * expansion, inplanes, 1, 1),
            bn=init_bn(planes * expansion))
    return p


# ---------------------------------------------------------------------------
# Bottleneck forward
# ---------------------------------------------------------------------------

def bottleneck_forward_nhwc(p, x):
    cfg = p['cfg']
    stride, planes = cfg['stride'], cfg['planes']
    N, H, W, Cin = x.shape
    Cout = planes * 4

    x_bf = x.astype(jnp.bfloat16)
    x2d = x_bf.reshape(N * H * W, Cin)

    # conv1 (1x1): fused pre-activation (bn0/ReLU) + folded bn1 + ReLU epilogue
    w1, b1 = fold_bn_into_w1x1(p['conv1'], p['bn1'])
    pre_scale = pre_bias = None
    pre_relu = False
    if not cfg['start_block']:
        pre_relu = True
        if not cfg['exclude_bn0']:
            s0, c0 = bn_scale_bias(p['bn0'])
            pre_scale, pre_bias = s0.reshape(1, -1), c0.reshape(1, -1)
    out = fused_matmul(x2d, w1, pre_scale=pre_scale, pre_bias=pre_bias,
                       pre_relu=pre_relu, post_bias=b1, post_relu=True,
                       out_dtype=jnp.bfloat16)
    out = out.reshape(N, H, W, planes)

    # conv2 (3x3, stride): folded bn2 + ReLU epilogue, no materialized im2col
    out = conv3x3_bn_act(out, p['conv2'], p['bn2'], stride=stride, relu=True,
                         out_dtype=jnp.bfloat16)
    _, Ho, Wo, _ = out.shape

    # identity path
    if 'downsample' in p:
        xs = x_bf if stride == 1 else x_bf[:, ::stride, ::stride, :]
        wd, bd = fold_bn_into_w1x1(p['downsample']['conv'], p['downsample']['bn'])
        identity = fused_matmul(xs.reshape(N * Ho * Wo, Cin), wd,
                                post_bias=bd, out_dtype=jnp.float32)
    else:
        identity = x.reshape(N * H * W, Cin)      # stride==1 and Cin == Cout

    # conv3 (1x1): folded bn3 (start) + residual add + bn3/ReLU (end), fused
    if cfg['start_block']:
        w3, b3 = fold_bn_into_w1x1(p['conv3'], p['bn3'])
        post_bias3 = b3
        post2_scale = post2_bias = None
    else:
        w3 = jnp.transpose(p['conv3'][:, :, 0, 0]).astype(jnp.bfloat16)
        post_bias3 = None
        if cfg['end_block']:
            s3, c3 = bn_scale_bias(p['bn3'])
            post2_scale, post2_bias = s3.reshape(1, -1), c3.reshape(1, -1)
        else:
            post2_scale = post2_bias = None
    out2d = fused_matmul(out.reshape(N * Ho * Wo, planes), w3,
                         post_bias=post_bias3, post_relu=False,
                         residual=identity,
                         post2_scale=post2_scale, post2_bias=post2_bias,
                         out_dtype=jnp.float32)
    return out2d.reshape(N, Ho, Wo, Cout)


def bottleneck_apply(p, x_nchw):
    x = jnp.transpose(x_nchw, (0, 2, 3, 1))       # NCHW -> NHWC
    y = bottleneck_forward_nhwc(p, x)
    return jnp.transpose(y, (0, 3, 1, 2))         # NHWC -> NCHW


# ---------------------------------------------------------------------------
# Demo
# ---------------------------------------------------------------------------

if __name__ == "__main__":
    key = jax.random.PRNGKey(0)
    kp1, kp2, kp3, kp4, kx1, kx2 = jax.random.split(key, 6)

    # Chain of three Bottleneck blocks (start / middle / end): inplanes=128,
    # planes=32 (expansion 4 -> 128 channels), batch=2, 16x16 spatial.
    blk_start = init_bottleneck(kp1, 128, 32, stride=1, start_block=True)
    blk_mid = init_bottleneck(kp2, 128, 32, stride=1)                 # has bn0
    blk_end = init_bottleneck(kp3, 128, 32, stride=1, end_block=True,
                              exclude_bn0=True)

    x = jax.random.normal(kx1, (2, 128, 16, 16), jnp.float32)
    y = bottleneck_apply(blk_start, x)
    y = bottleneck_apply(blk_mid, y)
    y = bottleneck_apply(blk_end, y)
    y = jax.block_until_ready(y)
    assert y.shape == (2, 128, 16, 16), y.shape

    # Strided block with a conv1x1(stride)+BN downsample on the identity path.
    blk_ds = init_bottleneck(kp4, 64, 32, stride=2, downsample=True,
                             start_block=True)
    x2 = jax.random.normal(kx2, (2, 64, 16, 16), jnp.float32)
    y2 = bottleneck_apply(blk_ds, x2)
    y2 = jax.block_until_ready(y2)
    assert y2.shape == (2, 128, 8, 8), y2.shape

    print("KERNEL_OK")
</pallas_src>

<mosaic_0001>
module attributes {stable_mosaic.version = 11 : i64} {
  func.func @kernel(%arg0: i32, %arg1: i32, %arg2: i32, %arg3: memref<256x128xbf16, #tpu.memory_space<vmem>>, %arg4: memref<128x32xbf16, #tpu.memory_space<vmem>>, %arg5: memref<1x32xf32, #tpu.memory_space<vmem>>, %arg6: memref<256x32xbf16, #tpu.memory_space<vmem>>, %arg7: memref<256x32xf32, #tpu.memory_space<vmem>>) attributes {dimension_semantics = [#tpu.dimension_semantics<parallel>, #tpu.dimension_semantics<parallel>, #tpu.dimension_semantics<arbitrary>], iteration_bounds = array<i64: 2, 1, 1>, scalar_prefetch = 0 : i64, scratch_operands = 1 : i64, tpu.core_type = #tpu.core_type<tc>, window_params = [{transform_indices = @transform_0, window_bounds = array<i64: 256, 128>}, {transform_indices = @transform_1, window_bounds = array<i64: 128, 32>}, {transform_indices = @transform_2, window_bounds = array<i64: 1, 32>}, {transform_indices = @transform_3, window_bounds = array<i64: 256, 32>}]} {
    %c0_i32 = arith.constant 0 : i32
    %0 = arith.cmpi eq, %arg2, %c0_i32 : i32
    %1 = arith.extui %0 : i1 to i32
    %c0_i32_0 = arith.constant 0 : i32
    %2 = arith.cmpi ne, %1, %c0_i32_0 : i32
    scf.if %2 {
      %cst_10 = arith.constant 0.000000e+00 : f32
      %12 = vector.broadcast %cst_10 : f32 to vector<256x32xf32>
      %c0_11 = arith.constant 0 : index
      %c0_12 = arith.constant 0 : index
      %13 = vector.load %arg7[%c0_11, %c0_12] : memref<256x32xf32, #tpu.memory_space<vmem>>, vector<256x32xf32>
      tpu.vector_store %arg7[%c0_11, %c0_12], %12 {strides = array<i32>} : memref<256x32xf32, #tpu.memory_space<vmem>>, vector<256x32xf32>,
    } else {
    }
    %c0 = arith.constant 0 : index
    %c0_1 = arith.constant 0 : index
    %3 = vector.load %arg3[%c0, %c0_1] : memref<256x128xbf16, #tpu.memory_space<vmem>>, vector<256x128xbf16>
    %c0_2 = arith.constant 0 : index
    %c0_3 = arith.constant 0 : index
    %4 = vector.load %arg7[%c0_2, %c0_3] : memref<256x32xf32, #tpu.memory_space<vmem>>, vector<256x32xf32>
    %c0_4 = arith.constant 0 : index
    %c0_5 = arith.constant 0 : index
    %5 = vector.load %arg4[%c0_4, %c0_5] : memref<128x32xbf16, #tpu.memory_space<vmem>>, vector<128x32xbf16>
    %cst = arith.constant dense<0.000000e+00> : vector<256x32xf32>
    %6 = tpu.matmul %3, %5, %cst {dimension_numbers = #tpu.dot_dimension_numbers<[1], [0], [0], [1], [0, 0, 1, 1], [], []>} : vector<256x128xbf16>, vector<128x32xbf16>, vector<256x32xf32> -> vector<256x32xf32>
    %7 = arith.addf %4, %6 : vector<256x32xf32>
    %c0_6 = arith.constant 0 : index
    %c0_7 = arith.constant 0 : index
    %8 = vector.load %arg7[%c0_6, %c0_7] : memref<256x32xf32, #tpu.memory_space<vmem>>, vector<256x32xf32>
    tpu.vector_store %arg7[%c0_6, %c0_7], %7 {strides = array<i32>} : memref<256x32xf32, #tpu.memory_space<vmem>>, vector<256x32xf32>,
    %c0_i32_8 = arith.constant 0 : i32
    %9 = arith.cmpi eq, %arg2, %c0_i32_8 : i32
    %10 = arith.extui %9 : i1 to i32
    %c0_i32_9 = arith.constant 0 : i32
    %11 = arith.cmpi ne, %10, %c0_i32_9 : i32
    scf.if %11 {
      %c0_10 = arith.constant 0 : index
      %c0_11 = arith.constant 0 : index
      %12 = vector.load %arg7[%c0_10, %c0_11] : memref<256x32xf32, #tpu.memory_space<vmem>>, vector<256x32xf32>
      %c0_12 = arith.constant 0 : index
      %c0_13 = arith.constant 0 : index
      %13 = vector.load %arg5[%c0_12, %c0_13] : memref<1x32xf32, #tpu.memory_space<vmem>>, vector<1x32xf32>
      %14 = vector.broadcast %13 : vector<1x32xf32> to vector<256x32xf32>
      %15 = arith.addf %12, %14 : vector<256x32xf32>
      %cst_14 = arith.constant 0.000000e+00 : f32
      %16 = vector.broadcast %cst_14 : f32 to vector<256x32xf32>
      %17 = arith.maximumf %15, %16 : vector<256x32xf32>
      %18 = arith.truncf %17 : vector<256x32xf32> to vector<256x32xbf16>
      %c0_15 = arith.constant 0 : index
      %c0_16 = arith.constant 0 : index
      %19 = vector.load %arg6[%c0_15, %c0_16] : memref<256x32xbf16, #tpu.memory_space<vmem>>, vector<256x32xbf16>
      tpu.vector_store %arg6[%c0_15, %c0_16], %18 {strides = array<i32>} : memref<256x32xbf16, #tpu.memory_space<vmem>>, vector<256x32xbf16>,
    } else {
    }
    return
  }
  func.func @transform_0(%arg0: i32, %arg1: i32, %arg2: i32) -> (i32, i32) {
    %c0_i32 = arith.constant 0 : i32
    return %arg0, %arg2 : i32, i32
  }
  func.func @transform_1(%arg0: i32, %arg1: i32, %arg2: i32) -> (i32, i32) {
    %c0_i32 = arith.constant 0 : i32
    return %arg2, %arg1 : i32, i32
  }
  func.func @transform_2(%arg0: i32, %arg1: i32, %arg2: i32) -> (i32, i32) {
    %c0_i32 = arith.constant 0 : i32
    %c0_i32_0 = arith.constant 0 : i32
    return %c0_i32, %arg1 : i32, i32
  }
  func.func @transform_3(%arg0: i32, %arg1: i32, %arg2: i32) -> (i32, i32) {
    %c0_i32 = arith.constant 0 : i32
    return %arg0, %arg1 : i32, i32
  }
}

</mosaic_0001>

<llo_original>
// kernel: tpu_custom_call.1
$region0: #{tpu_custom_call.1}
  #allocation0 [shape = 'u32[]', space=smem, size = 0x4, offset = 0x4, fixed_abs, tag = 'smem constant byte address 0x4 - core index']
  #allocation1 [shape = 'u32[144,128]{1,0:T(1,128)}', space=vmem, size = 0x12000, scoped, tag = 'internal scratch']
  #allocation2 [shape = 'f32[256,32]{1,0:T(8,128)}', space=vmem, size = 0x20000, scoped, tag = 'scratch operand']
  %s0 = inlined_call_operand.hbm [shape: bf16[512,128], index: 0, kind: input, shape index: {}]
  %s1 = inlined_call_operand.hbm [shape: bf16[128,32], index: 1, kind: input, shape index: {}]
  %s2 = inlined_call_operand.hbm [shape: f32[1,32], index: 2, kind: input, shape index: {}]
  %s3 = inlined_call_operand.hbm [shape: bf16[512,32], index: 3, kind: output, shape index: {}]
  %s4 = sld [smem:[#allocation0]]
  $region65: #{tpu_custom_call.1} parent=0
    _
  %s6 = ssub.s32 1, %s4
  %s7 = scalar_select 0, %s6, %s4
  $region1: #{tpu_custom_call.1} parent=0
    #allocation3 [shape = 'u8[131072]{0}', space=vmem, size = 0x20000, scoped, tag = 'input window, operand 0']
    #allocation4 [shape = 's32[2]{0}', space=sflag, size = 0x8, scoped, tag = 'scoped memory for tpu_custom_call.1']
    #allocation5 [shape = 's32[2]{0}', space=sflag, size = 0x8, scoped, tag = 'scoped memory for tpu_custom_call.1']
    #allocation6 [shape = 'u8[32768]{0}', space=vmem, size = 0x8000, scoped, tag = 'input window, operand 1, single buffered']
    #allocation7 [shape = 's32[1]{0}', space=sflag, size = 0x4, scoped, tag = 'scoped memory for tpu_custom_call.1']
    #allocation8 [shape = 'u8[512]{0}', space=vmem, size = 0x400, scoped, tag = 'input window, operand 2, single buffered']
    #allocation9 [shape = 'u8[131072]{0}', space=vmem, size = 0x20000, scoped, tag = 'output window, operand 0']
    %8 = vsyncpa [#allocation4], 0
    %s9 = scalar_lea.sflag [#allocation4], 1
    %10 = vsyncpa %s9, 0
    %11 = vsyncpa [#allocation7], 0
    %12 = vsyncpa [#allocation5], 0
    %s13 = scalar_lea.sflag [#allocation5], 1
    %14 = vsyncpa %s13, 0
    loop: start=0, step=1, limit=4
    $region2: #{tpu_custom_call.1} parent=1 // loop_pre_header
      _
    $region3: #{tpu_custom_call.1} parent=1 // loop_header
      %s16 = sphi 0, %s20
      %p17 = scmp.ge.s32.totalorder %s16, 4
      %s23 = sphi 0, %s42
      %s24 = sphi 0, %s38
      %s25 = sphi 0, %s34
      %s26 = sphi 0, %s23
      %s27 = sphi 0, %s24
      %s28 = sphi 0, %s25
      %s29 = sphi 0, %s26
      %s30 = sphi 0, %s27
      %s31 = sphi 0, %s28
      %s47 = sphi 0, %s49
      %s50 = sphi 0, %s47
      %s51 = sphi 0, %s50
      %s67 = sphi 0, %s51
      %s75 = sphi 0, %s77
      %s78 = sphi 0, %s75
      %s79 = sphi 0, %s78
      %s95 = sphi 0, %s79
      %s101 = sphi 0, %s103
      %s104 = sphi 0, %s101
      %s105 = sphi 0, %s104
      %s121 = sphi 0, %s105
      %s129 = sphi 0, %s131
      %s132 = sphi 0, %s129
      %s133 = sphi 0, %s132
      %s149 = sphi 0, %s133
    $region4: #{tpu_custom_call.1} parent=1 // loop_header_branch
      %19 = sbr.rel (%p17) target = $region8
    $region5: #{tpu_custom_call.1} parent=1 // loop_body
      %s21 = ssub.s32 %s16, 1
      %s22 = ssub.s32 %s16, 2
      %s32 = sadd.s32 1, %s25
      %p33 = scmp.ge.s32.totalorder %s32, 1
      %s34 = scalar_select %p33, 0, %s32
      %s35 = sadd.s32 1, %s24
      %s36 = scalar_select %p33, %s35, %s24
      %p37 = scmp.ge.s32.totalorder %s36, 1
      %s38 = scalar_select %p37, 0, %s36
      %s39 = sadd.s32 1, %s23
      %s40 = scalar_select %p37, %s39, %s23
      %p41 = scmp.ge.s32.totalorder %s40, 2
      %s42 = scalar_select %p41, 0, %s40
      %s43 = ssub.s32 %s23, %s42
      %s44 = ssub.s32 %s25, %s34
      %s45 = sor.u32 %s43, %s44
      %p46 = scmp.eq.s32.totalorder %s45, 0
      %s48 = sadd.s32 %s47, 1
      %s49 = scalar_select %p46, %s47, %s48
      %p52 = pneg %p46
      %p53 = scmp.eq.s32.totalorder %s16, 1
      %p54 = por %p52, %p53
      %p55 = scmp.ne.s32.totalorder %s47, %s50
      %p56 = scmp.eq.s32.totalorder %s16, 0
      %p57 = por %p55, %p56
      %p58 = scmp.ne.s32.totalorder %s47, %s50
      %p59 = scmp.eq.s32.totalorder %s21, 1
      %p60 = por %p58, %p59
      %p61 = scmp.ne.s32.totalorder %s50, %s51
      %p62 = scmp.eq.s32.totalorder %s21, 0
      %p63 = por %p61, %p62
      %p64 = scmp.ne.s32.totalorder %s50, %s51
      %p65 = scmp.eq.s32.totalorder %s22, 1
      %p66 = por %p64, %p65
      %p68 = scmp.ne.s32.totalorder %s51, %s67
      %p69 = scmp.eq.s32.totalorder %s22, 0
      %p70 = por %p68, %p69
      %s71 = ssub.s32 %s25, %s34
      %s72 = ssub.s32 %s24, %s38
      %s73 = sor.u32 %s71, %s72
      %p74 = scmp.eq.s32.totalorder %s73, 0
      %s76 = sadd.s32 %s75, 1
      %s77 = scalar_select %p74, %s75, %s76
      %p80 = pneg %p74
      %p81 = scmp.eq.s32.totalorder %s16, 1
      %p82 = por %p80, %p81
      %p83 = scmp.ne.s32.totalorder %s75, %s78
      %p84 = scmp.eq.s32.totalorder %s16, 0
      %p85 = por %p83, %p84
      %p86 = scmp.ne.s32.totalorder %s75, %s78
      %p87 = scmp.eq.s32.totalorder %s21, 1
      %p88 = por %p86, %p87
      %p89 = scmp.ne.s32.totalorder %s78, %s79
      %p90 = scmp.eq.s32.totalorder %s21, 0
      %p91 = por %p89, %p90
      %p92 = scmp.ne.s32.totalorder %s78, %s79
      %p93 = scmp.eq.s32.totalorder %s22, 1
      %p94 = por %p92, %p93
      %p96 = scmp.ne.s32.totalorder %s79, %s95
      %p97 = scmp.eq.s32.totalorder %s22, 0
      %p98 = por %p96, %p97
      %s99 = ssub.s32 %s24, %s38
      %p100 = scmp.eq.s32.totalorder %s99, 0
      %s102 = sadd.s32 %s101, 1
      %s103 = scalar_select %p100, %s101, %s102
      %p106 = pneg %p100
      %p107 = scmp.eq.s32.totalorder %s16, 1
      %p108 = por %p106, %p107
      %p109 = scmp.ne.s32.totalorder %s101, %s104
      %p110 = scmp.eq.s32.totalorder %s16, 0
      %p111 = por %p109, %p110
      %p112 = scmp.ne.s32.totalorder %s101, %s104
      %p113 = scmp.eq.s32.totalorder %s21, 1
      %p114 = por %p112, %p113
      %p115 = scmp.ne.s32.totalorder %s104, %s105
      %p116 = scmp.eq.s32.totalorder %s21, 0
      %p117 = por %p115, %p116
      %p118 = scmp.ne.s32.totalorder %s104, %s105
      %p119 = scmp.eq.s32.totalorder %s22, 1
      %p120 = por %p118, %p119
      %p122 = scmp.ne.s32.totalorder %s105, %s121
      %p123 = scmp.eq.s32.totalorder %s22, 0
      %p124 = por %p122, %p123
      %s125 = ssub.s32 %s23, %s42
      %s126 = ssub.s32 %s24, %s38
      %s127 = sor.u32 %s125, %s126
      %p128 = scmp.eq.s32.totalorder %s127, 0
      %s130 = sadd.s32 %s129, 1
      %s131 = scalar_select %p128, %s129, %s130
      %p134 = pneg %p128
      %p135 = scmp.eq.s32.totalorder %s16, 1
      %p136 = por %p134, %p135
      %p137 = scmp.ne.s32.totalorder %s129, %s132
      %p138 = scmp.eq.s32.totalorder %s16, 0
      %p139 = por %p137, %p138
      %p140 = scmp.ne.s32.totalorder %s129, %s132
      %p141 = scmp.eq.s32.totalorder %s21, 1
      %p142 = por %p140, %p141
      %p143 = scmp.ne.s32.totalorder %s132, %s133
      %p144 = scmp.eq.s32.totalorder %s21, 0
      %p145 = por %p143, %p144
      %p146 = scmp.ne.s32.totalorder %s132, %s133
      %p147 = scmp.eq.s32.totalorder %s22, 1
      %p148 = por %p146, %p147
      %p150 = scmp.ne.s32.totalorder %s133, %s149
      %p151 = scmp.eq.s32.totalorder %s22, 0
      %p152 = por %p150, %p151
      %p153 = scmp.le.s32.totalorder 1, %s16
      %p154 = scmp.lt.s32.totalorder %s16, 3
      %p155 = pnand %p153, %p154
      %p156 = pneg %p155
      // Predicated region
      $region9: #{tpu_custom_call.1} parent=5 // pred_check
        _
      $region10: #{tpu_custom_call.1} parent=5 // pred_check_branch
        %158 = sbr.rel (%p155) target = $region12
      $region11: #{tpu_custom_call.1} parent=5 // pred_region
        %s159 = ssub.s32 %s16, 1
        // Predicated region
        $region13: #{tpu_custom_call.1} parent=11 // pred_check
          %p160 = pneg %p91
        $region14: #{tpu_custom_call.1} parent=11 // pred_check_branch
          %162 = sbr.rel (%p160) target = $region16
        $region15: #{tpu_custom_call.1} parent=11 // pred_region
          %s163 = smul.u32 16, %s28
          %s165 = ssub.s32 1024, 1024
          %166 = vsyncadd [#allocation7], %s165
          %s167 = sadd.s32 %s27, %s163
          %s168 = smul.addr %s167, 64
          %s169 = scalar_lea.hbm %s1, %s168
          %s170 = sshll.u32 [#allocation6], 4
          %s171 = int_to_ptr.vmem [resolvable:$true] %s170
          %176 = dma.hbm_to_vmem [thread:$0]  %s169, 1024, %s171, [#allocation7], 64, 64, 4
        $region16: #{tpu_custom_call.1} parent=11 // pred_fallthru
          _
        // Predicated region
        $region17: #{tpu_custom_call.1} parent=11 // pred_check
          %p177 = pneg %p117
        $region18: #{tpu_custom_call.1} parent=11 // pred_check_branch
          %179 = sbr.rel (%p177) target = $region20
        $region19: #{tpu_custom_call.1} parent=11 // pred_region
          %s181 = ssub.s32 16, 16
          %182 = vsyncadd [#allocation7], %s181
          %s183 = smul.addr %s27, 16
          %s184 = scalar_lea.hbm %s2, %s183
          %s186 = sshll.u32 [#allocation8], 4
          %s187 = int_to_ptr.vmem [resolvable:$true] %s186
          %189 = dma.hbm_to_vmem [thread:$0]  %s184, 16, %s187, [#allocation7]
        $region20: #{tpu_custom_call.1} parent=11 // pred_fallthru
          _
      $region12: #{tpu_custom_call.1} parent=5 // pred_fallthru
        _
      %p190 = scmp.lt.s32.totalorder %s16, 2
      // Predicated region
      $region21: #{tpu_custom_call.1} parent=5 // pred_check
        %p191 = pneg %p190
      $region22: #{tpu_custom_call.1} parent=5 // pred_check_branch
        %193 = sbr.rel (%p191) target = $region24
      $region23: #{tpu_custom_call.1} parent=5 // pred_region
        // Predicated region
        $region25: #{tpu_custom_call.1} parent=23 // pred_check
          %p194 = pneg %p57
        $region26: #{tpu_custom_call.1} parent=23 // pred_check_branch
          %196 = sbr.rel (%p194) target = $region28
        $region27: #{tpu_custom_call.1} parent=23 // pred_region
          %s197 = sand.u32 %s47, 1
          %s198 = scalar_lea.sflag [#allocation4], %s197
          %s199 = sand.u32 %s47, 1
          %s200 = smul.addr %s199, 128
          %s201 = scalar_lea.vmem [#allocation3], %s200
          %s202 = smul.u32 32, %s23
          %s204 = ssub.s32 2048, 2048
          %205 = vsyncadd %s198, %s204
          %s206 = sadd.s32 %s25, %s202
          %s207 = smul.addr %s206, 64
          %s208 = scalar_lea.hbm %s0, %s207
          %s209 = sshll.u32 %s201, 4
          %s210 = int_to_ptr.vmem [resolvable:$true] %s209
          %215 = dma.hbm_to_vmem [thread:$0]  %s208, 2048, %s210, %s198, 64, 64, 4
        $region28: #{tpu_custom_call.1} parent=23 // pred_fallthru
          _
      $region24: #{tpu_custom_call.1} parent=5 // pred_fallthru
        _
      %p216 = scmp.le.s32.totalorder 1, %s16
      %p217 = scmp.lt.s32.totalorder %s16, 3
      %p218 = pnand %p216, %p217
      %p219 = pneg %p218
      // Predicated region
      $region29: #{tpu_custom_call.1} parent=5 // pred_check
        _
      $region30: #{tpu_custom_call.1} parent=5 // pred_check_branch
        %221 = sbr.rel (%p218) target = $region32
      $region31: #{tpu_custom_call.1} parent=5 // pred_region
        %s222 = ssub.s32 %s16, 1
        %s223 = sand.u32 %s50, 1
        %s224 = scalar_lea.sflag [#allocation4], %s223
        %s225 = sand.u32 %s50, 1
        %s226 = smul.addr %s225, 128
        %s227 = scalar_lea.vmem [#allocation3], %s226
        // Predicated region
        $region33: #{tpu_custom_call.1} parent=31 // pred_check
          %p228 = pneg %p63
        $region34: #{tpu_custom_call.1} parent=31 // pred_check_branch
          %230 = sbr.rel (%p228) target = $region36
        $region35: #{tpu_custom_call.1} parent=31 // pred_region
          %231 = dma.done %s224, 2048
        $region36: #{tpu_custom_call.1} parent=31 // pred_fallthru
          _
        // Predicated region
        $region37: #{tpu_custom_call.1} parent=31 // pred_check
          %p232 = pneg %p91
        $region38: #{tpu_custom_call.1} parent=31 // pred_check_branch
          %234 = sbr.rel (%p232) target = $region40
        $region39: #{tpu_custom_call.1} parent=31 // pred_region
          %235 = dma.done [#allocation7], 1024
        $region40: #{tpu_custom_call.1} parent=31 // pred_fallthru
          _
        // Predicated region
        $region41: #{tpu_custom_call.1} parent=31 // pred_check
          %p236 = pneg %p117
        $region42: #{tpu_custom_call.1} parent=31 // pred_check_branch
          %238 = sbr.rel (%p236) target = $region44
        $region43: #{tpu_custom_call.1} parent=31 // pred_region
          %239 = dma.done [#allocation7], 16
        $region44: #{tpu_custom_call.1} parent=31 // pred_fallthru
          _
        %s240 = sand.u32 %s50, 1
        %s241 = scalar_lea.sflag [#allocation4], %s240
        %s242 = sand.u32 %s50, 1
        %s243 = smul.addr %s242, 128
        %s244 = scalar_lea.vmem [#allocation3], %s243
        %p245 = pneg %p63
        %p246 = pneg %p60
        %p247 = pneg %p91
        %p248 = pneg %p88
        %p249 = pneg %p117
        %p250 = pneg %p114
        %p251 = pneg %p145
        %p252 = pneg %p142
        %s253 = sand.u32 %s132, 1
        %s254 = scalar_lea.sflag [#allocation5], %s253
        %s255 = sand.u32 %s132, 1
        %s256 = smul.addr %s255, 128
        %s257 = scalar_lea.vmem [#allocation9], %s256
        %s258 = smul.u32 32, %s26
        %s259 = smul.u32 16, %s28
        %s260 = smul.u32 32, %s26
        %p262 = scmp.eq.s32.totalorder %s28, 0
        // Predicated region
        $region45: #{tpu_custom_call.1} parent=31 // pred_check
          %p263 = pneg %p262
        $region46: #{tpu_custom_call.1} parent=31 // pred_check_branch
          %265 = sbr.rel (%p263) target = $region48
        $region47: #{tpu_custom_call.1} parent=31 // pred_region
          %vm266 = vcmask 261120
          %267 = vst.msk [vmem:[#allocation2] sm:$0xff] %vm266, 0.0
          %268 = vst.msk [vmem:[#allocation2 + $0x8] sm:$0xff] %vm266, 0.0
          %269 = vst.msk [vmem:[#allocation2 + $0x10] sm:$0xff] %vm266, 0.0
          %270 = vst.msk [vmem:[#allocation2 + $0x18] sm:$0xff] %vm266, 0.0
          %271 = vst.msk [vmem:[#allocation2 + $0x20] sm:$0xff] %vm266, 0.0
          %272 = vst.msk [vmem:[#allocation2 + $0x28] sm:$0xff] %vm266, 0.0
          %273 = vst.msk [vmem:[#allocation2 + $0x30] sm:$0xff] %vm266, 0.0
          %274 = vst.msk [vmem:[#allocation2 + $0x38] sm:$0xff] %vm266, 0.0
          %275 = vst.msk [vmem:[#allocation2 + $0x40] sm:$0xff] %vm266, 0.0
          %276 = vst.msk [vmem:[#allocation2 + $0x48] sm:$0xff] %vm266, 0.0
          %277 = vst.msk [vmem:[#allocation2 + $0x50] sm:$0xff] %vm266, 0.0
          %278 = vst.msk [vmem:[#allocation2 + $0x58] sm:$0xff] %vm266, 0.0
          %279 = vst.msk [vmem:[#allocation2 + $0x60] sm:$0xff] %vm266, 0.0
          %280 = vst.msk [vmem:[#allocation2 + $0x68] sm:$0xff] %vm266, 0.0
          %281 = vst.msk [vmem:[#allocation2 + $0x70] sm:$0xff] %vm266, 0.0
          %282 = vst.msk [vmem:[#allocation2 + $0x78] sm:$0xff] %vm266, 0.0
          %283 = vst.msk [vmem:[#allocation2 + $0x80] sm:$0xff] %vm266, 0.0
          %284 = vst.msk [vmem:[#allocation2 + $0x88] sm:$0xff] %vm266, 0.0
          %285 = vst.msk [vmem:[#allocation2 + $0x90] sm:$0xff] %vm266, 0.0
          %286 = vst.msk [vmem:[#allocation2 + $0x98] sm:$0xff] %vm266, 0.0
          %287 = vst.msk [vmem:[#allocation2 + $0xa0] sm:$0xff] %vm266, 0.0
          %288 = vst.msk [vmem:[#allocation2 + $0xa8] sm:$0xff] %vm266, 0.0
          %289 = vst.msk [vmem:[#allocation2 + $0xb0] sm:$0xff] %vm266, 0.0
          %290 = vst.msk [vmem:[#allocation2 + $0xb8] sm:$0xff] %vm266, 0.0
          %291 = vst.msk [vmem:[#allocation2 + $0xc0] sm:$0xff] %vm266, 0.0
          %292 = vst.msk [vmem:[#allocation2 + $0xc8] sm:$0xff] %vm266, 0.0
          %293 = vst.msk [vmem:[#allocation2 + $0xd0] sm:$0xff] %vm266, 0.0
          %294 = vst.msk [vmem:[#allocation2 + $0xd8] sm:$0xff] %vm266, 0.0
          %295 = vst.msk [vmem:[#allocation2 + $0xe0] sm:$0xff] %vm266, 0.0
          %296 = vst.msk [vmem:[#allocation2 + $0xe8] sm:$0xff] %vm266, 0.0
          %297 = vst.msk [vmem:[#allocation2 + $0xf0] sm:$0xff] %vm266, 0.0
          %298 = vst.msk [vmem:[#allocation2 + $0xf8] sm:$0xff] %vm266, 0.0
        $region48: #{tpu_custom_call.1} parent=31 // pred_fallthru
          _
        %v299 = vld [vmem:[%s227] sm:$0xf]
        %v300 = vld [vmem:[%s227 + $0x4] sm:$0xf]
        %v301 = vld [vmem:[%s227 + $0x8] sm:$0xf]
        %v302 = vld [vmem:[%s227 + $0xc] sm:$0xf]
        %v303 = vld [vmem:[%s227 + $0x10] sm:$0xf]
        %v304 = vld [vmem:[%s227 + $0x14] sm:$0xf]
        %v305 = vld [vmem:[%s227 + $0x18] sm:$0xf]
        %v306 = vld [vmem:[%s227 + $0x1c] sm:$0xf]
        %v307 = vld [vmem:[%s227 + $0x20] sm:$0xf]
        %v308 = vld [vmem:[%s227 + $0x24] sm:$0xf]
        %v309 = vld [vmem:[%s227 + $0x28] sm:$0xf]
        %v310 = vld [vmem:[%s227 + $0x2c] sm:$0xf]
        %v311 = vld [vmem:[%s227 + $0x30] sm:$0xf]
        %v312 = vld [vmem:[%s227 + $0x34] sm:$0xf]
        %v313 = vld [vmem:[%s227 + $0x38] sm:$0xf]
        %v314 = vld [vmem:[%s227 + $0x3c] sm:$0xf]
        %v315 = vld [vmem:[%s227 + $0x40] sm:$0xf]
        %v316 = vld [vmem:[%s227 + $0x44] sm:$0xf]
        %v317 = vld [vmem:[%s227 + $0x48] sm:$0xf]
        %v318 = vld [vmem:[%s227 + $0x4c] sm:$0xf]
        %v319 = vld [vmem:[%s227 + $0x50] sm:$0xf]
        %v320 = vld [vmem:[%s227 + $0x54] sm:$0xf]
        %v321 = vld [vmem:[%s227 + $0x58] sm:$0xf]
        %v322 = vld [vmem:[%s227 + $0x5c] sm:$0xf]
        %v323 = vld [vmem:[%s227 + $0x60] sm:$0xf]
        %v324 = vld [vmem:[%s227 + $0x64] sm:$0xf]
        %v325 = vld [vmem:[%s227 + $0x68] sm:$0xf]
        %v326 = vld [vmem:[%s227 + $0x6c] sm:$0xf]
        %v327 = vld [vmem:[%s227 + $0x70] sm:$0xf]
        %v328 = vld [vmem:[%s227 + $0x74] sm:$0xf]
        %v329 = vld [vmem:[%s227 + $0x78] sm:$0xf]
        %v330 = vld [vmem:[%s227 + $0x7c] sm:$0xf]
        %v331 = vld [vmem:[#allocation2] sm:$0xff]
        %v332 = vld [vmem:[#allocation2 + $0x8] sm:$0xff]
        %v333 = vld [vmem:[#allocation2 + $0x10] sm:$0xff]
        %v334 = vld [vmem:[#allocation2 + $0x18] sm:$0xff]
        %v335 = vld [vmem:[#allocation2 + $0x20] sm:$0xff]
        %v336 = vld [vmem:[#allocation2 + $0x28] sm:$0xff]
        %v337 = vld [vmem:[#allocation2 + $0x30] sm:$0xff]
        %v338 = vld [vmem:[#allocation2 + $0x38] sm:$0xff]
        %v339 = vld [vmem:[#allocation2 + $0x40] sm:$0xff]
        %v340 = vld [vmem:[#allocation2 + $0x48] sm:$0xff]
        %v341 = vld [vmem:[#allocation2 + $0x50] sm:$0xff]
        %v342 = vld [vmem:[#allocation2 + $0x58] sm:$0xff]
        %v343 = vld [vmem:[#allocation2 + $0x60] sm:$0xff]
        %v344 = vld [vmem:[#allocation2 + $0x68] sm:$0xff]
        %v345 = vld [vmem:[#allocation2 + $0x70] sm:$0xff]
        %v346 = vld [vmem:[#allocation2 + $0x78] sm:$0xff]
        %v347 = vld [vmem:[#allocation2 + $0x80] sm:$0xff]
        %v348 = vld [vmem:[#allocation2 + $0x88] sm:$0xff]
        %v349 = vld [vmem:[#allocation2 + $0x90] sm:$0xff]
        %v350 = vld [vmem:[#allocation2 + $0x98] sm:$0xff]
        %v351 = vld [vmem:[#allocation2 + $0xa0] sm:$0xff]
        %v352 = vld [vmem:[#allocation2 + $0xa8] sm:$0xff]
        %v353 = vld [vmem:[#allocation2 + $0xb0] sm:$0xff]
        %v354 = vld [vmem:[#allocation2 + $0xb8] sm:$0xff]
        %v355 = vld [vmem:[#allocation2 + $0xc0] sm:$0xff]
        %v356 = vld [vmem:[#allocation2 + $0xc8] sm:$0xff]
        %v357 = vld [vmem:[#allocation2 + $0xd0] sm:$0xff]
        %v358 = vld [vmem:[#allocation2 + $0xd8] sm:$0xff]
        %v359 = vld [vmem:[#allocation2 + $0xe0] sm:$0xff]
        %v360 = vld [vmem:[#allocation2 + $0xe8] sm:$0xff]
        %v361 = vld [vmem:[#allocation2 + $0xf0] sm:$0xff]
        %v362 = vld [vmem:[#allocation2 + $0xf8] sm:$0xff]
        %v363 = vld [vmem:[#allocation6] sm:$0xf]
        %v364 = vld [vmem:[#allocation6 + $0x4] sm:$0xf]
        %v365 = vld [vmem:[#allocation6 + $0x8] sm:$0xf]
        %v366 = vld [vmem:[#allocation6 + $0xc] sm:$0xf]
        %v367 = vld [vmem:[#allocation6 + $0x10] sm:$0xf]
        %v368 = vld [vmem:[#allocation6 + $0x14] sm:$0xf]
        %v369 = vld [vmem:[#allocation6 + $0x18] sm:$0xf]
        %v370 = vld [vmem:[#allocation6 + $0x1c] sm:$0xf]
        %v371 = vld [vmem:[#allocation6 + $0x20] sm:$0xf]
        %v372 = vld [vmem:[#allocation6 + $0x24] sm:$0xf]
        %v373 = vld [vmem:[#allocation6 + $0x28] sm:$0xf]
        %v374 = vld [vmem:[#allocation6 + $0x2c] sm:$0xf]
        %v375 = vld [vmem:[#allocation6 + $0x30] sm:$0xf]
        %v376 = vld [vmem:[#allocation6 + $0x34] sm:$0xf]
        %v377 = vld [vmem:[#allocation6 + $0x38] sm:$0xf]
        %v378 = vld [vmem:[#allocation6 + $0x3c] sm:$0xf]
        %v411 = vunpack.c.l.b16 %v299
        %v412 = vunpack.c.l.b16 %v300
        %v413 = vunpack.c.l.b16 %v301
        %v414 = vunpack.c.l.b16 %v302
        %v415 = vunpack.c.l.b16 %v303
        %v416 = vunpack.c.l.b16 %v304
        %v417 = vunpack.c.l.b16 %v305
        %v418 = vunpack.c.l.b16 %v306
        %v419 = vunpack.c.l.b16 %v307
        %v420 = vunpack.c.l.b16 %v308
        %v421 = vunpack.c.l.b16 %v309
        %v422 = vunpack.c.l.b16 %v310
        %v423 = vunpack.c.l.b16 %v311
        %v424 = vunpack.c.l.b16 %v312
        %v425 = vunpack.c.l.b16 %v313
        %v426 = vunpack.c.l.b16 %v314
        %v427 = vunpack.c.l.b16 %v315
        %v428 = vunpack.c.l.b16 %v316
        %v429 = vunpack.c.l.b16 %v317
        %v430 = vunpack.c.l.b16 %v318
        %v431 = vunpack.c.l.b16 %v319
        %v432 = vunpack.c.l.b16 %v320
        %v433 = vunpack.c.l.b16 %v321
        %v434 = vunpack.c.l.b16 %v322
        %v435 = vunpack.c.l.b16 %v323
        %v436 = vunpack.c.l.b16 %v324
        %v437 = vunpack.c.l.b16 %v325
        %v438 = vunpack.c.l.b16 %v326
        %v439 = vunpack.c.l.b16 %v327
        %v440 = vunpack.c.l.b16 %v328
        %v441 = vunpack.c.l.b16 %v329
        %v442 = vunpack.c.l.b16 %v330
        %v443 = vpack.c.b16 %v412, %v411
        %v444 = vpack.c.b16 %v414, %v413
        %v445 = vpack.c.b16 %v416, %v415
        %v446 = vpack.c.b16 %v418, %v417
        %v447 = vpack.c.b16 %v420, %v419
        %v448 = vpack.c.b16 %v422, %v421
        %v449 = vpack.c.b16 %v424, %v423
        %v450 = vpack.c.b16 %v426, %v425
        %v451 = vpack.c.b16 %v428, %v427
        %v452 = vpack.c.b16 %v430, %v429
        %v453 = vpack.c.b16 %v432, %v431
        %v454 = vpack.c.b16 %v434, %v433
        %v455 = vpack.c.b16 %v436, %v435
        %v456 = vpack.c.b16 %v438, %v437
        %v457 = vpack.c.b16 %v440, %v439
        %v458 = vpack.c.b16 %v442, %v441
        %v491 = vunpack.c.l.b16 %v363
        %v492 = vunpack.c.l.b16 %v364
        %v493 = vunpack.c.l.b16 %v365
        %v494 = vunpack.c.l.b16 %v366
        %v495 = vunpack.c.l.b16 %v367
        %v496 = vunpack.c.l.b16 %v368
        %v497 = vunpack.c.l.b16 %v369
        %v498 = vunpack.c.l.b16 %v370
        %v499 = vunpack.c.l.b16 %v371
        %v500 = vunpack.c.l.b16 %v372
        %v501 = vunpack.c.l.b16 %v373
        %v502 = vunpack.c.l.b16 %v374
        %v503 = vunpack.c.l.b16 %v375
        %v504 = vunpack.c.l.b16 %v376
        %v505 = vunpack.c.l.b16 %v377
        %v506 = vunpack.c.l.b16 %v378
        %v507 = vpack.c.b16 %v492, %v491
        %v508 = vpack.c.b16 %v494, %v493
        %v509 = vpack.c.b16 %v496, %v495
        %v510 = vpack.c.b16 %v498, %v497
        %v511 = vpack.c.b16 %v500, %v499
        %v512 = vpack.c.b16 %v502, %v501
        %v513 = vpack.c.b16 %v504, %v503
        %v514 = vpack.c.b16 %v506, %v505
        %523 = vmatprep.subr.bf16.mxu0 0
        %524 = vmatpush1.bf16.msra.mxu0 %v507
        %525 = vmatprep.subr.bf16.mxu0 0
        %526 = vmatpush1.bf16.msra.mxu0 %v508
        %527 = vmatprep.subr.bf16.mxu0 0
        %528 = vmatpush1.bf16.msra.mxu0 %v509
        %529 = vmatprep.subr.bf16.mxu0 0
        %530 = vmatpush1.bf16.msra.mxu0 %v510
        %531 = vmatprep.subr.bf16.mxu0 0
        %532 = vmatpush1.bf16.msra.mxu0 %v511
        %533 = vmatprep.subr.bf16.mxu0 0
        %534 = vmatpush1.bf16.msra.mxu0 %v512
        %535 = vmatprep.subr.bf16.mxu0 0
        %536 = vmatpush1.bf16.msra.mxu0 %v513
        %537 = vmatprep.subr.bf16.mxu0 0
        %538 = vmatpush1.bf16.msra.mxu0 %v514
        %539 = vmatprep.subr.bf16.mxu0 0
        %540 = vmatpush1.bf16.msra.mxu0 0
        %541 = vmatprep.subr.bf16.mxu0 0
        %542 = vmatpush1.bf16.msra.mxu0 0
        %543 = vmatprep.subr.bf16.mxu0 0
        %544 = vmatpush1.bf16.msra.mxu0 0
        %545 = vmatprep.subr.bf16.mxu0 0
        %546 = vmatpush1.bf16.msra.mxu0 0
        %547 = vmatprep.subr.bf16.mxu0 0
        %548 = vmatpush1.bf16.msra.mxu0 0
        %549 = vmatprep.subr.bf16.mxu0 0
        %550 = vmatpush1.bf16.msra.mxu0 0
        %551 = vmatprep.subr.bf16.mxu0 0
        %552 = vmatpush1.bf16.msra.mxu0 0
        %553 = vmatprep.subr.bf16.mxu0 0
        %554 = vmatpush1.bf16.msra.mxu0 0
        %555 = vmatprep.mubr.bf16.mxu0 0
        %556 = vmatmul.mubr.bf16.gmra.mrb[0].mxu0 %v443
        %v557 = vpop.f32.mrb[0].mxu0
        %v558 = vadd.f32 0.0, %v557
        %v559 = vpop.f32.mrb[0].mxu0
        %v560 = vpop.f32.mrb[0].mxu0
        %v561 = vadd.f32 0.0, %v560
        %v562 = vpop.f32.mrb[0].mxu0
        %563 = vmatprep.mubr.bf16.mxu0 0
        %564 = vmatmul.mubr.bf16.gmra.mrb[0].mxu0 %v444
        %v565 = vpop.f32.mrb[0].mxu0
        %v566 = vadd.f32 0.0, %v565
        %v567 = vpop.f32.mrb[0].mxu0
        %v568 = vpop.f32.mrb[0].mxu0
        %v569 = vadd.f32 0.0, %v568
        %v570 = vpop.f32.mrb[0].mxu0
        %571 = vmatprep.mubr.bf16.mxu0 0
        %572 = vmatmul.mubr.bf16.gmra.mrb[0].mxu0 %v445
        %v573 = vpop.f32.mrb[0].mxu0
        %v574 = vadd.f32 0.0, %v573
        %v575 = vpop.f32.mrb[0].mxu0
        %v576 = vpop.f32.mrb[0].mxu0
        %v577 = vadd.f32 0.0, %v576
        %v578 = vpop.f32.mrb[0].mxu0
        %579 = vmatprep.mubr.bf16.mxu0 0
        %580 = vmatmul.mubr.bf16.gmra.mrb[0].mxu0 %v446
        %v581 = vpop.f32.mrb[0].mxu0
        %v582 = vadd.f32 0.0, %v581
        %v583 = vpop.f32.mrb[0].mxu0
        %v584 = vpop.f32.mrb[0].mxu0
        %v585 = vadd.f32 0.0, %v584
        %v586 = vpop.f32.mrb[0].mxu0
        %587 = vmatprep.mubr.bf16.mxu0 0
        %588 = vmatmul.mubr.bf16.gmra.mrb[0].mxu0 %v447
        %v589 = vpop.f32.mrb[0].mxu0
        %v590 = vadd.f32 0.0, %v589
        %v591 = vpop.f32.mrb[0].mxu0
        %v592 = vpop.f32.mrb[0].mxu0
        %v593 = vadd.f32 0.0, %v592
        %v594 = vpop.f32.mrb[0].mxu0
        %595 = vmatprep.mubr.bf16.mxu0 0
        %596 = vmatmul.mubr.bf16.gmra.mrb[0].mxu0 %v448
        %v597 = vpop.f32.mrb[0].mxu0
        %v598 = vadd.f32 0.0, %v597
        %v599 = vpop.f32.mrb[0].mxu0
        %v600 = vpop.f32.mrb[0].mxu0
        %v601 = vadd.f32 0.0, %v600
        %v602 = vpop.f32.mrb[0].mxu0
        %603 = vmatprep.mubr.bf16.mxu0 0
        %604 = vmatmul.mubr.bf16.gmra.mrb[0].mxu0 %v449
        %v605 = vpop.f32.mrb[0].mxu0
        %v606 = vadd.f32 0.0, %v605
        %v607 = vpop.f32.mrb[0].mxu0
        %v608 = vpop.f32.mrb[0].mxu0
        %v609 = vadd.f32 0.0, %v608
        %v610 = vpop.f32.mrb[0].mxu0
        %611 = vmatprep.mubr.bf16.mxu0 0
        %612 = vmatmul.mubr.bf16.gmra.mrb[0].mxu0 %v450
        %v613 = vpop.f32.mrb[0].mxu0
        %v614 = vadd.f32 0.0, %v613
        %v615 = vpop.f32.mrb[0].mxu0
        %v616 = vpop.f32.mrb[0].mxu0
        %v617 = vadd.f32 0.0, %v616
        %v618 = vpop.f32.mrb[0].mxu0
        %619 = vmatprep.mubr.bf16.mxu0 0
        %620 = vmatmul.mubr.bf16.gmra.mrb[0].mxu0 %v451
        %v621 = vpop.f32.mrb[0].mxu0
        %v622 = vadd.f32 0.0, %v621
        %v623 = vpop.f32.mrb[0].mxu0
        %v624 = vpop.f32.mrb[0].mxu0
        %v625 = vadd.f32 0.0, %v624
        %v626 = vpop.f32.mrb[0].mxu0
        %627 = vmatprep.mubr.bf16.mxu0 0
        %628 = vmatmul.mubr.bf16.gmra.mrb[0].mxu0 %v452
        %v629 = vpop.f32.mrb[0].mxu0
        %v630 = vadd.f32 0.0, %v629
        %v631 = vpop.f32.mrb[0].mxu0
        %v632 = vpop.f32.mrb[0].mxu0
        %v633 = vadd.f32 0.0, %v632
        %v634 = vpop.f32.mrb[0].mxu0
        %635 = vmatprep.mubr.bf16.mxu0 0
        %636 = vmatmul.mubr.bf16.gmra.mrb[0].mxu0 %v453
        %v637 = vpop.f32.mrb[0].mxu0
        %v638 = vadd.f32 0.0, %v637
        %v639 = vpop.f32.mrb[0].mxu0
        %v640 = vpop.f32.mrb[0].mxu0
        %v641 = vadd.f32 0.0, %v640
        %v642 = vpop.f32.mrb[0].mxu0
        %643 = vmatprep.mubr.bf16.mxu0 0
        %644 = vmatmul.mubr.bf16.gmra.mrb[0].mxu0 %v454
        %v645 = vpop.f32.mrb[0].mxu0
        %v646 = vadd.f32 0.0, %v645
        %v647 = vpop.f32.mrb[0].mxu0
        %v648 = vpop.f32.mrb[0].mxu0
        %v649 = vadd.f32 0.0, %v648
        %v650 = vpop.f32.mrb[0].mxu0
        %651 = vmatprep.mubr.bf16.mxu0 0
        %652 = vmatmul.mubr.bf16.gmra.mrb[0].mxu0 %v455
        %v653 = vpop.f32.mrb[0].mxu0
        %v654 = vadd.f32 0.0, %v653
        %v655 = vpop.f32.mrb[0].mxu0
        %v656 = vpop.f32.mrb[0].mxu0
        %v657 = vadd.f32 0.0, %v656
        %v658 = vpop.f32.mrb[0].mxu0
        %659 = vmatprep.mubr.bf16.mxu0 0
        %660 = vmatmul.mubr.bf16.gmra.mrb[0].mxu0 %v456
        %v661 = vpop.f32.mrb[0].mxu0
        %v662 = vadd.f32 0.0, %v661
        %v663 = vpop.f32.mrb[0].mxu0
        %v664 = vpop.f32.mrb[0].mxu0
        %v665 = vadd.f32 0.0, %v664
        %v666 = vpop.f32.mrb[0].mxu0
        %667 = vmatprep.mubr.bf16.mxu0 0
        %668 = vmatmul.mubr.bf16.gmra.mrb[0].mxu0 %v457
        %v669 = vpop.f32.mrb[0].mxu0
        %v670 = vadd.f32 0.0, %v669
        %v671 = vpop.f32.mrb[0].mxu0
        %v672 = vpop.f32.mrb[0].mxu0
        %v673 = vadd.f32 0.0, %v672
        %v674 = vpop.f32.mrb[0].mxu0
        %675 = vmatprep.mubr.bf16.mxu0 0
        %676 = vmatmul.mubr.bf16.gmra.mrb[0].mxu0 %v458
        %v677 = vpop.f32.mrb[0].mxu0
        %v678 = vadd.f32 0.0, %v677
        %v679 = vpop.f32.mrb[0].mxu0
        %v680 = vpop.f32.mrb[0].mxu0
        %v681 = vadd.f32 0.0, %v680
        %v682 = vpop.f32.mrb[0].mxu0
        %683 = vdwg.mxu0
        %v684 = vadd.f32 %v331, %v558
        %v685 = vadd.f32 %v332, %v561
        %v686 = vadd.f32 %v333, %v566
        %v687 = vadd.f32 %v334, %v569
        %v688 = vadd.f32 %v335, %v574
        %v689 = vadd.f32 %v336, %v577
        %v690 = vadd.f32 %v337, %v582
        %v691 = vadd.f32 %v338, %v585
        %v692 = vadd.f32 %v339, %v590
        %v693 = vadd.f32 %v340, %v593
        %v694 = vadd.f32 %v341, %v598
        %v695 = vadd.f32 %v342, %v601
        %v696 = vadd.f32 %v343, %v606
        %v697 = vadd.f32 %v344, %v609
        %v698 = vadd.f32 %v345, %v614
        %v699 = vadd.f32 %v346, %v617
        %v700 = vadd.f32 %v347, %v622
        %v701 = vadd.f32 %v348, %v625
        %v702 = vadd.f32 %v349, %v630
        %v703 = vadd.f32 %v350, %v633
        %v704 = vadd.f32 %v351, %v638
        %v705 = vadd.f32 %v352, %v641
        %v706 = vadd.f32 %v353, %v646
        %v707 = vadd.f32 %v354, %v649
        %v708 = vadd.f32 %v355, %v654
        %v709 = vadd.f32 %v356, %v657
        %v710 = vadd.f32 %v357, %v662
        %v711 = vadd.f32 %v358, %v665
        %v712 = vadd.f32 %v359, %v670
        %v713 = vadd.f32 %v360, %v673
        %v714 = vadd.f32 %v361, %v678
        %v715 = vadd.f32 %v362, %v681
        %vm716 = vcmask 261120
        %717 = vst.msk [vmem:[#allocation2] sm:$0xff] %vm716, %v684
        %718 = vst.msk [vmem:[#allocation2 + $0x8] sm:$0xff] %vm716, %v685
        %719 = vst.msk [vmem:[#allocation2 + $0x10] sm:$0xff] %vm716, %v686
        %720 = vst.msk [vmem:[#allocation2 + $0x18] sm:$0xff] %vm716, %v687
        %721 = vst.msk [vmem:[#allocation2 + $0x20] sm:$0xff] %vm716, %v688
        %722 = vst.msk [vmem:[#allocation2 + $0x28] sm:$0xff] %vm716, %v689
        %723 = vst.msk [vmem:[#allocation2 + $0x30] sm:$0xff] %vm716, %v690
        %724 = vst.msk [vmem:[#allocation2 + $0x38] sm:$0xff] %vm716, %v691
        %725 = vst.msk [vmem:[#allocation2 + $0x40] sm:$0xff] %vm716, %v692
        %726 = vst.msk [vmem:[#allocation2 + $0x48] sm:$0xff] %vm716, %v693
        %727 = vst.msk [vmem:[#allocation2 + $0x50] sm:$0xff] %vm716, %v694
        %728 = vst.msk [vmem:[#allocation2 + $0x58] sm:$0xff] %vm716, %v695
        %729 = vst.msk [vmem:[#allocation2 + $0x60] sm:$0xff] %vm716, %v696
        %730 = vst.msk [vmem:[#allocation2 + $0x68] sm:$0xff] %vm716, %v697
        %731 = vst.msk [vmem:[#allocation2 + $0x70] sm:$0xff] %vm716, %v698
        %732 = vst.msk [vmem:[#allocation2 + $0x78] sm:$0xff] %vm716, %v699
        %733 = vst.msk [vmem:[#allocation2 + $0x80] sm:$0xff] %vm716, %v700
        %734 = vst.msk [vmem:[#allocation2 + $0x88] sm:$0xff] %vm716, %v701
        %735 = vst.msk [vmem:[#allocation2 + $0x90] sm:$0xff] %vm716, %v702
        %736 = vst.msk [vmem:[#allocation2 + $0x98] sm:$0xff] %vm716, %v703
        %737 = vst.msk [vmem:[#allocation2 + $0xa0] sm:$0xff] %vm716, %v704
        %738 = vst.msk [vmem:[#allocation2 + $0xa8] sm:$0xff] %vm716, %v705
        %739 = vst.msk [vmem:[#allocation2 + $0xb0] sm:$0xff] %vm716, %v706
        %740 = vst.msk [vmem:[#allocation2 + $0xb8] sm:$0xff] %vm716, %v707
        %741 = vst.msk [vmem:[#allocation2 + $0xc0] sm:$0xff] %vm716, %v708
        %742 = vst.msk [vmem:[#allocation2 + $0xc8] sm:$0xff] %vm716, %v709
        %743 = vst.msk [vmem:[#allocation2 + $0xd0] sm:$0xff] %vm716, %v710
        %744 = vst.msk [vmem:[#allocation2 + $0xd8] sm:$0xff] %vm716, %v711
        %745 = vst.msk [vmem:[#allocation2 + $0xe0] sm:$0xff] %vm716, %v712
        %746 = vst.msk [vmem:[#allocation2 + $0xe8] sm:$0xff] %vm716, %v713
        %747 = vst.msk [vmem:[#allocation2 + $0xf0] sm:$0xff] %vm716, %v714
        %748 = vst.msk [vmem:[#allocation2 + $0xf8] sm:$0xff] %vm716, %v715
        // Predicated region
        $region49: #{tpu_custom_call.1} parent=31 // pred_check
          %p749 = pneg %p262
        $region50: #{tpu_custom_call.1} parent=31 // pred_check_branch
          %751 = sbr.rel (%p749) target = $region52
        $region51: #{tpu_custom_call.1} parent=31 // pred_region
          %v752 = vld [vmem:[#allocation2] sm:$0xff]
          %v753 = vld [vmem:[#allocation2 + $0x8] sm:$0xff]
          %v754 = vld [vmem:[#allocation2 + $0x10] sm:$0xff]
          %v755 = vld [vmem:[#allocation2 + $0x18] sm:$0xff]
          %v756 = vld [vmem:[#allocation2 + $0x20] sm:$0xff]
          %v757 = vld [vmem:[#allocation2 + $0x28] sm:$0xff]
          %v758 = vld [vmem:[#allocation2 + $0x30] sm:$0xff]
          %v759 = vld [vmem:[#allocation2 + $0x38] sm:$0xff]
          %v760 = vld [vmem:[#allocation2 + $0x40] sm:$0xff]
          %v761 = vld [vmem:[#allocation2 + $0x48] sm:$0xff]
          %v762 = vld [vmem:[#allocation2 + $0x50] sm:$0xff]
          %v763 = vld [vmem:[#allocation2 + $0x58] sm:$0xff]
          %v764 = vld [vmem:[#allocation2 + $0x60] sm:$0xff]
          %v765 = vld [vmem:[#allocation2 + $0x68] sm:$0xff]
          %v766 = vld [vmem:[#allocation2 + $0x70] sm:$0xff]
          %v767 = vld [vmem:[#allocation2 + $0x78] sm:$0xff]
          %v768 = vld [vmem:[#allocation2 + $0x80] sm:$0xff]
          %v769 = vld [vmem:[#allocation2 + $0x88] sm:$0xff]
          %v770 = vld [vmem:[#allocation2 + $0x90] sm:$0xff]
          %v771 = vld [vmem:[#allocation2 + $0x98] sm:$0xff]
          %v772 = vld [vmem:[#allocation2 + $0xa0] sm:$0xff]
          %v773 = vld [vmem:[#allocation2 + $0xa8] sm:$0xff]
          %v774 = vld [vmem:[#allocation2 + $0xb0] sm:$0xff]
          %v775 = vld [vmem:[#allocation2 + $0xb8] sm:$0xff]
          %v776 = vld [vmem:[#allocation2 + $0xc0] sm:$0xff]
          %v777 = vld [vmem:[#allocation2 + $0xc8] sm:$0xff]
          %v778 = vld [vmem:[#allocation2 + $0xd0] sm:$0xff]
          %v779 = vld [vmem:[#allocation2 + $0xd8] sm:$0xff]
          %v780 = vld [vmem:[#allocation2 + $0xe0] sm:$0xff]
          %v781 = vld [vmem:[#allocation2 + $0xe8] sm:$0xff]
          %v782 = vld [vmem:[#allocation2 + $0xf0] sm:$0xff]
          %v783 = vld [vmem:[#allocation2 + $0xf8] sm:$0xff]
          %v784 = vld [vmem:[#allocation8] sm:$0x1]
          %v786 = vlaneseq
          %v787 = vshrl.u32 %v786, 7
          %v788 = vsub.s32 0, %v787
          %v789 = vrot.slane %v784, %v788
          %v791 = vadd.f32 %v752, %v789
          %v792 = vadd.f32 %v753, %v789
          %v793 = vadd.f32 %v754, %v789
          %v794 = vadd.f32 %v755, %v789
          %v795 = vadd.f32 %v756, %v789
          %v796 = vadd.f32 %v757, %v789
          %v797 = vadd.f32 %v758, %v789
          %v798 = vadd.f32 %v759, %v789
          %v799 = vadd.f32 %v760, %v789
          %v800 = vadd.f32 %v761, %v789
          %v801 = vadd.f32 %v762, %v789
          %v802 = vadd.f32 %v763, %v789
          %v803 = vadd.f32 %v764, %v789
          %v804 = vadd.f32 %v765, %v789
          %v805 = vadd.f32 %v766, %v789
          %v806 = vadd.f32 %v767, %v789
          %v807 = vadd.f32 %v768, %v789
          %v808 = vadd.f32 %v769, %v789
          %v809 = vadd.f32 %v770, %v789
          %v810 = vadd.f32 %v771, %v789
          %v811 = vadd.f32 %v772, %v789
          %v812 = vadd.f32 %v773, %v789
          %v813 = vadd.f32 %v774, %v789
          %v814 = vadd.f32 %v775, %v789
          %v815 = vadd.f32 %v776, %v789
          %v816 = vadd.f32 %v777, %v789
          %v817 = vadd.f32 %v778, %v789
          %v818 = vadd.f32 %v779, %v789
          %v819 = vadd.f32 %v780, %v789
          %v820 = vadd.f32 %v781, %v789
          %v821 = vadd.f32 %v782, %v789
          %v822 = vadd.f32 %v783, %v789
          %v823 = vmax.f32 %v791, 0.0
          %v824 = vmax.f32 %v792, 0.0
          %v825 = vmax.f32 %v793, 0.0
          %v826 = vmax.f32 %v794, 0.0
          %v827 = vmax.f32 %v795, 0.0
          %v828 = vmax.f32 %v796, 0.0
          %v829 = vmax.f32 %v797, 0.0
          %v830 = vmax.f32 %v798, 0.0
          %v831 = vmax.f32 %v799, 0.0
          %v832 = vmax.f32 %v800, 0.0
          %v833 = vmax.f32 %v801, 0.0
          %v834 = vmax.f32 %v802, 0.0
          %v835 = vmax.f32 %v803, 0.0
          %v836 = vmax.f32 %v804, 0.0
          %v837 = vmax.f32 %v805, 0.0
          %v838 = vmax.f32 %v806, 0.0
          %v839 = vmax.f32 %v807, 0.0
          %v840 = vmax.f32 %v808, 0.0
          %v841 = vmax.f32 %v809, 0.0
          %v842 = vmax.f32 %v810, 0.0
          %v843 = vmax.f32 %v811, 0.0
          %v844 = vmax.f32 %v812, 0.0
          %v845 = vmax.f32 %v813, 0.0
          %v846 = vmax.f32 %v814, 0.0
          %v847 = vmax.f32 %v815, 0.0
          %v848 = vmax.f32 %v816, 0.0
          %v849 = vmax.f32 %v817, 0.0
          %v850 = vmax.f32 %v818, 0.0
          %v851 = vmax.f32 %v819, 0.0
          %v852 = vmax.f32 %v820, 0.0
          %v853 = vmax.f32 %v821, 0.0
          %v854 = vmax.f32 %v822, 0.0
          %v855 = vpack.c.bf16 %v824, %v823
          %v856 = vpack.c.bf16 %v826, %v825
          %v857 = vpack.c.bf16 %v828, %v827
          %v858 = vpack.c.bf16 %v830, %v829
          %v859 = vpack.c.bf16 %v832, %v831
          %v860 = vpack.c.bf16 %v834, %v833
          %v861 = vpack.c.bf16 %v836, %v835
          %v862 = vpack.c.bf16 %v838, %v837
          %v863 = vpack.c.bf16 %v840, %v839
          %v864 = vpack.c.bf16 %v842, %v841
          %v865 = vpack.c.bf16 %v844, %v843
          %v866 = vpack.c.bf16 %v846, %v845
          %v867 = vpack.c.bf16 %v848, %v847
          %v868 = vpack.c.bf16 %v850, %v849
          %v869 = vpack.c.bf16 %v852, %v851
          %v870 = vpack.c.bf16 %v854, %v853
          %v887 = vunpack.c.l.b16 %v855
          %v888 = vunpack.c.h.b16 %v855
          %v889 = vunpack.c.l.b16 %v856
          %v890 = vunpack.c.h.b16 %v856
          %v891 = vunpack.c.l.b16 %v857
          %v892 = vunpack.c.h.b16 %v857
          %v893 = vunpack.c.l.b16 %v858
          %v894 = vunpack.c.h.b16 %v858
          %v895 = vunpack.c.l.b16 %v859
          %v896 = vunpack.c.h.b16 %v859
          %v897 = vunpack.c.l.b16 %v860
          %v898 = vunpack.c.h.b16 %v860
          %v899 = vunpack.c.l.b16 %v861
          %v900 = vunpack.c.h.b16 %v861
          %v901 = vunpack.c.l.b16 %v862
          %v902 = vunpack.c.h.b16 %v862
          %v903 = vunpack.c.l.b16 %v863
          %v904 = vunpack.c.h.b16 %v863
          %v905 = vunpack.c.l.b16 %v864
          %v906 = vunpack.c.h.b16 %v864
          %v907 = vunpack.c.l.b16 %v865
          %v908 = vunpack.c.h.b16 %v865
          %v909 = vunpack.c.l.b16 %v866
          %v910 = vunpack.c.h.b16 %v866
          %v911 = vunpack.c.l.b16 %v867
          %v912 = vunpack.c.h.b16 %v867
          %v913 = vunpack.c.l.b16 %v868
          %v914 = vunpack.c.h.b16 %v868
          %v915 = vunpack.c.l.b16 %v869
          %v916 = vunpack.c.h.b16 %v869
          %v917 = vunpack.c.l.b16 %v870
          %v918 = vunpack.c.h.b16 %v870
          %v919 = vpack.c.b16 %v887, %v887
          %v920 = vpack.c.b16 %v888, %v888
          %v921 = vpack.c.b16 %v889, %v889
          %v922 = vpack.c.b16 %v890, %v890
          %v923 = vpack.c.b16 %v891, %v891
          %v924 = vpack.c.b16 %v892, %v892
          %v925 = vpack.c.b16 %v893, %v893
          %v926 = vpack.c.b16 %v894, %v894
          %v927 = vpack.c.b16 %v895, %v895
          %v928 = vpack.c.b16 %v896, %v896
          %v929 = vpack.c.b16 %v897, %v897
          %v930 = vpack.c.b16 %v898, %v898
          %v931 = vpack.c.b16 %v899, %v899
          %v932 = vpack.c.b16 %v900, %v900
          %v933 = vpack.c.b16 %v901, %v901
          %v934 = vpack.c.b16 %v902, %v902
          %v935 = vpack.c.b16 %v903, %v903
          %v936 = vpack.c.b16 %v904, %v904
          %v937 = vpack.c.b16 %v905, %v905
          %v938 = vpack.c.b16 %v906, %v906
          %v939 = vpack.c.b16 %v907, %v907
          %v940 = vpack.c.b16 %v908, %v908
          %v941 = vpack.c.b16 %v909, %v909
          %v942 = vpack.c.b16 %v910, %v910
          %v943 = vpack.c.b16 %v911, %v911
          %v944 = vpack.c.b16 %v912, %v912
          %v945 = vpack.c.b16 %v913, %v913
          %v946 = vpack.c.b16 %v914, %v914
          %v947 = vpack.c.b16 %v915, %v915
          %v948 = vpack.c.b16 %v916, %v916
          %v949 = vpack.c.b16 %v917, %v917
          %v950 = vpack.c.b16 %v918, %v918
          %vm983 = vcmask 257024
          %984 = vst.msk [vmem:[%s257] sm:$0xf] %vm983, %v919
          %985 = vst.msk [vmem:[%s257 + $0x4] sm:$0xf] %vm983, %v920
          %986 = vst.msk [vmem:[%s257 + $0x8] sm:$0xf] %vm983, %v921
          %987 = vst.msk [vmem:[%s257 + $0xc] sm:$0xf] %vm983, %v922
          %988 = vst.msk [vmem:[%s257 + $0x10] sm:$0xf] %vm983, %v923
          %989 = vst.msk [vmem:[%s257 + $0x14] sm:$0xf] %vm983, %v924
          %990 = vst.msk [vmem:[%s257 + $0x18] sm:$0xf] %vm983, %v925
          %991 = vst.msk [vmem:[%s257 + $0x1c] sm:$0xf] %vm983, %v926
          %992 = vst.msk [vmem:[%s257 + $0x20] sm:$0xf] %vm983, %v927
          %993 = vst.msk [vmem:[%s257 + $0x24] sm:$0xf] %vm983, %v928
          %994 = vst.msk [vmem:[%s257 + $0x28] sm:$0xf] %vm983, %v929
          %995 = vst.msk [vmem:[%s257 + $0x2c] sm:$0xf] %vm983, %v930
          %996 = vst.msk [vmem:[%s257 + $0x30] sm:$0xf] %vm983, %v931
          %997 = vst.msk [vmem:[%s257 + $0x34] sm:$0xf] %vm983, %v932
          %998 = vst.msk [vmem:[%s257 + $0x38] sm:$0xf] %vm983, %v933
          %999 = vst.msk [vmem:[%s257 + $0x3c] sm:$0xf] %vm983, %v934
          %1000 = vst.msk [vmem:[%s257 + $0x40] sm:$0xf] %vm983, %v935
          %1001 = vst.msk [vmem:[%s257 + $0x44] sm:$0xf] %vm983, %v936
          %1002 = vst.msk [vmem:[%s257 + $0x48] sm:$0xf] %vm983, %v937
          %1003 = vst.msk [vmem:[%s257 + $0x4c] sm:$0xf] %vm983, %v938
          %1004 = vst.msk [vmem:[%s257 + $0x50] sm:$0xf] %vm983, %v939
          %1005 = vst.msk [vmem:[%s257 + $0x54] sm:$0xf] %vm983, %v940
          %1006 = vst.msk [vmem:[%s257 + $0x58] sm:$0xf] %vm983, %v941
          %1007 = vst.msk [vmem:[%s257 + $0x5c] sm:$0xf] %vm983, %v942
          %1008 = vst.msk [vmem:[%s257 + $0x60] sm:$0xf] %vm983, %v943
          %1009 = vst.msk [vmem:[%s257 + $0x64] sm:$0xf] %vm983, %v944
          %1010 = vst.msk [vmem:[%s257 + $0x68] sm:$0xf] %vm983, %v945
          %1011 = vst.msk [vmem:[%s257 + $0x6c] sm:$0xf] %vm983, %v946
          %1012 = vst.msk [vmem:[%s257 + $0x70] sm:$0xf] %vm983, %v947
          %1013 = vst.msk [vmem:[%s257 + $0x74] sm:$0xf] %vm983, %v948
          %1014 = vst.msk [vmem:[%s257 + $0x78] sm:$0xf] %vm983, %v949
          %1015 = vst.msk [vmem:[%s257 + $0x7c] sm:$0xf] %vm983, %v950
        $region52: #{tpu_custom_call.1} parent=31 // pred_fallthru
          _
        %s1016 = sand.u32 %s132, 1
        %s1017 = scalar_lea.sflag [#allocation5], %s1016
        %s1018 = sand.u32 %s132, 1
        %s1019 = smul.addr %s1018, 128
        %s1020 = scalar_lea.vmem [#allocation9], %s1019
        // Predicated region
        $region53: #{tpu_custom_call.1} parent=31 // pred_check
          %p1021 = pneg %p142
        $region54: #{tpu_custom_call.1} parent=31 // pred_check_branch
          %1023 = sbr.rel (%p1021) target = $region56
        $region55: #{tpu_custom_call.1} parent=31 // pred_region
          %s1024 = smul.u32 32, %s26
          %s1026 = ssub.s32 2048, 2048
          %1027 = vsyncadd %s1017, %s1026
          %s1028 = sadd.s32 %s27, %s1024
          %s1029 = smul.addr %s1028, 64
          %s1030 = scalar_lea.hbm %s3, %s1029
          %s1031 = sshll.u32 %s1020, 4
          %s1032 = int_to_ptr.vmem [resolvable:$true] %s1031
          %1037 = dma.vmem_to_hbm [thread:$0]  %s1032, 2048, %s1030, %s1017, 64, 64, 4
        $region56: #{tpu_custom_call.1} parent=31 // pred_fallthru
          _
      $region32: #{tpu_custom_call.1} parent=5 // pred_fallthru
        _
      %p1038 = scmp.le.s32.totalorder 2, %s16
      // Predicated region
      $region57: #{tpu_custom_call.1} parent=5 // pred_check
        %p1039 = pneg %p1038
      $region58: #{tpu_custom_call.1} parent=5 // pred_check_branch
        %1041 = sbr.rel (%p1039) target = $region60
      $region59: #{tpu_custom_call.1} parent=5 // pred_region
        %s1042 = ssub.s32 %s16, 2
        // Predicated region
        $region61: #{tpu_custom_call.1} parent=59 // pred_check
          %p1043 = pneg %p148
        $region62: #{tpu_custom_call.1} parent=59 // pred_check_branch
          %1045 = sbr.rel (%p1043) target = $region64
        $region63: #{tpu_custom_call.1} parent=59 // pred_region
          %s1046 = sand.u32 %s133, 1
          %s1047 = scalar_lea.sflag [#allocation5], %s1046
          %s1048 = sand.u32 %s133, 1
          %s1049 = smul.addr %s1048, 128
          %s1050 = scalar_lea.vmem [#allocation9], %s1049
          %1051 = dma.done %s1047, 2048
        $region64: #{tpu_custom_call.1} parent=59 // pred_fallthru
          _
      $region60: #{tpu_custom_call.1} parent=5 // pred_fallthru
        _
    $region6: #{tpu_custom_call.1} parent=1 // loop_footer
      %s20 = sadd.s32 1, %s16
    $region7: #{tpu_custom_call.1} parent=1 // loop_footer_branch
      %15 = sbr.rel target = $region3
    $region8: #{tpu_custom_call.1} parent=1 // loop_exit
      _
    %1052 = vsyncpa [#allocation4], 1
    %s1053 = scalar_lea.sflag [#allocation4], 1
    %1054 = vsyncpa %s1053, 1
    %1055 = vsyncpa [#allocation7], 1
    %1056 = vsyncpa [#allocation5], 1
    %s1057 = scalar_lea.sflag [#allocation5], 1
    %1058 = vsyncpa %s1057, 1

</llo_original>
